<compile_context>
chip_gen: v5e
topology: v5e:2x2
jax: 0.10.0
libtpu: 0.0.40
codegen_flags: <defaults>
</compile_context>

<pallas_src>
import math

import jax
import jax.numpy as jnp
from jax.experimental import pallas as pl
from jax.experimental.pallas import tpu as pltpu

H1 = 512
H2 = 256


def _round_up(x, m):
    return (x + m - 1) // m * m


def _bytes(shape, dtype):
    return math.prod(shape) * jnp.dtype(dtype).itemsize


def _vmem_capacity_bytes():
    """Physical VMEM per TensorCore; conservative (v7x) default on failure."""
    try:
        info = pltpu.get_tpu_info()
        cap = getattr(info, "vmem_capacity_bytes", None)
        if cap:
            return int(cap)
    except Exception:
        pass
    return 64 << 20


def _choose_tk(d0, k_tile_max):
    """Largest 128-multiple dividing round_up(d0,128) that is <= k_tile_max.

    Falls back to k_tile_max (extra K padding) only if the divisors are tiny.
    """
    units = _round_up(d0, 128) // 128
    best = 128
    for d in range(1, units + 1):
        tk = 128 * d
        if units % d == 0 and tk <= k_tile_max:
            best = tk
    if best >= min(k_tile_max, 2048) // 2:
        return best
    return k_tile_max


# ----------------------------------------------------------------------------
# Kernels
# ----------------------------------------------------------------------------
def _disc_kernel_resident(x_ref, w1_ref, b1_ref, w2_ref, b2_ref, w3_ref,
                          b3_ref, out_ref):
    """Straight-line variant: w1 fully resident, grid = (batch tiles,)."""
    x = x_ref[...].astype(jnp.bfloat16)                        # in-kernel cast
    h1 = jnp.dot(x, w1_ref[...], preferred_element_type=jnp.float32)
    h1 = h1 + b1_ref[...]
    h1 = jnp.maximum(h1, 0.2 * h1)                             # LeakyReLU(0.2)

    h2 = jnp.dot(h1.astype(jnp.bfloat16), w2_ref[...],
                 preferred_element_type=jnp.float32)
    h2 = h2 + b2_ref[...]
    h2 = jnp.maximum(h2, 0.2 * h2)                             # LeakyReLU(0.2)

    # Layer 3 (N=1): VPU multiply + XLU lane reduction; b3 is a scalar in SMEM.
    val = jnp.sum(h2 * w3_ref[...], axis=-1, keepdims=True) + b3_ref[0]
    out_ref[...] = jnp.broadcast_to(val, out_ref.shape).astype(out_ref.dtype)


def _disc_kernel_ktiled(x_ref, w1_ref, b1_ref, w2_ref, b2_ref, w3_ref,
                        b3_ref, out_ref, acc_ref):
    """K-tiled variant for very large feature dims: grid = (nb, nk)."""
    k = pl.program_id(1)

    @pl.when(k == 0)
    def _():
        acc_ref[...] = jnp.zeros_like(acc_ref)

    acc_ref[...] += jnp.dot(x_ref[...].astype(jnp.bfloat16), w1_ref[...],
                            preferred_element_type=jnp.float32)

    @pl.when(k == pl.num_programs(1) - 1)
    def _():
        h1 = acc_ref[...] + b1_ref[...]
        acc_ref[...] = jnp.maximum(h1, 0.2 * h1)               # epilogue in place

        h2 = jnp.dot(acc_ref[...].astype(jnp.bfloat16), w2_ref[...],
                     preferred_element_type=jnp.float32)
        h2 = h2 + b2_ref[...]
        h2 = jnp.maximum(h2, 0.2 * h2)

        val = jnp.sum(h2 * w3_ref[...], axis=-1, keepdims=True) + b3_ref[0]
        out_ref[...] = jnp.broadcast_to(val, out_ref.shape).astype(out_ref.dtype)


# ----------------------------------------------------------------------------
# Wrapper
# ----------------------------------------------------------------------------
def discriminator_forward(img, params, *, batch_tile=512, force_k_tile=None):
    """img: (B, C, H, W) float32. Returns (B, 1) validity scores."""
    w1, b1, w2, b2, w3, b3 = params
    B = img.shape[0]
    x = img.reshape(B, -1)                       # flatten (same as torch .view); stays f32
    D0 = x.shape[1]

    # bf16 weights on the HBM/MXU path; biases and the tiny N=1 weight stay f32.
    w1b = w1.astype(jnp.bfloat16)
    w2b = w2.astype(jnp.bfloat16)
    b1r = b1.reshape(1, H1).astype(jnp.float32)
    b2r = b2.reshape(1, H2).astype(jnp.float32)
    w3r = w3.reshape(1, H2).astype(jnp.float32)
    b3s = b3.reshape(1).astype(jnp.float32)      # scalar bias -> SMEM

    cap = _vmem_capacity_bytes()
    budget = (cap * 3) // 4                      # ~96 MiB v5e/v6e, ~48 MiB v7x
    k_tile_max = 8192 if cap >= (96 << 20) else 4096

    small_resident = (_bytes((H1, H2), jnp.bfloat16)
                      + _bytes((1, H1), jnp.float32)
                      + 2 * _bytes((1, H2), jnp.float32)
                      + (2 << 20))               # slack for layouts / vreg spill temps

    def resident_bytes(tb):
        return (2 * _bytes((tb, D0), jnp.float32)       # x tile f32, double-buffered
                + 2 * _bytes((D0, H1), jnp.bfloat16)    # w1 (counted x2 conservatively)
                + 2 * _bytes((tb, 128), jnp.float32)    # lane-dense out tile
                + _bytes((tb, H1), jnp.float32)         # h1 temp
                + _bytes((tb, H2), jnp.float32)         # h2 temp
                + small_resident)

    def ktiled_bytes(tb, tk):
        return (2 * _bytes((tb, tk), jnp.float32)
                + 2 * _bytes((tk, H1), jnp.bfloat16)
                + _bytes((tb, H1), jnp.float32)         # accumulator scratch
                + 2 * _bytes((tb, 128), jnp.float32)
                + _bytes((tb, H2), jnp.float32)
                + small_resident)

    TB = max(16, _round_up(min(batch_tile, _round_up(B, 16)), 16))

    if force_k_tile is None:
        # Prefer keeping w1 resident (DMA'd exactly once); shrink the batch tile
        # before giving up on residency.
        tb_res = TB
        while tb_res > 16 and resident_bytes(tb_res) > budget:
            tb_res = max(16, _round_up(tb_res // 2, 16))
        resident = resident_bytes(tb_res) <= budget
        if resident:
            TB, TK = tb_res, D0
        else:
            TK = _choose_tk(D0, k_tile_max)
            while TB > 16 and ktiled_bytes(TB, TK) > budget:
                TB = max(16, _round_up(TB // 2, 16))
    else:
        resident = False
        TK = int(force_k_tile)
        assert TK % 128 == 0

    # Small-VMEM (v7x-like) parts have 2 TCs: make sure the parallel batch axis
    # has at least 2 tiles so megacore sharding is possible.
    if cap <= (64 << 20) and _round_up(B, 16) >= 32 and TB >= _round_up(B, 16):
        TB = _round_up((_round_up(B, 16) + 1) // 2, 16)

    Bp = _round_up(B, TB)
    nb = Bp // TB

    if resident:
        D0p, nk = D0, 1
    else:
        D0p = _round_up(D0, TK)
        nk = D0p // TK

    if Bp != B or D0p != D0:
        x = jnp.pad(x, ((0, Bp - B), (0, D0p - D0)))
    if D0p != D0:
        w1b = jnp.pad(w1b, ((0, D0p - D0), (0, 0)))

    est = resident_bytes(TB) if resident else ktiled_bytes(TB, TK)
    vmem_limit = int(min(budget, max(32 << 20, est + (2 << 20))))

    w1_passes = 1 if resident else nb
    cost = pl.CostEstimate(
        flops=2 * B * (D0 * H1 + H1 * H2 + H2),
        transcendentals=0,
        bytes_accessed=(_bytes((Bp, D0p), jnp.float32)
                        + w1_passes * _bytes((D0p, H1), jnp.bfloat16)
                        + _bytes((H1, H2), jnp.bfloat16)
                        + (H1 + 2 * H2 + 1) * 4
                        + _bytes((Bp, 128), jnp.float32)),
    )

    out_shape = jax.ShapeDtypeStruct((Bp, 128), jnp.float32)

    if resident:
        grid_spec = pltpu.PrefetchScalarGridSpec(
            num_scalar_prefetch=0,
            grid=(nb,),
            in_specs=[
                pl.BlockSpec((TB, D0p), lambda i: (i, 0)),           # x (f32)
                pl.BlockSpec((D0p, H1), lambda i: (0, 0)),           # w1 resident
                pl.BlockSpec((1, H1), lambda i: (0, 0)),             # b1
                pl.BlockSpec((H1, H2), lambda i: (0, 0)),            # w2 resident
                pl.BlockSpec((1, H2), lambda i: (0, 0)),             # b2
                pl.BlockSpec((1, H2), lambda i: (0, 0)),             # w3 row
                pl.BlockSpec(memory_space=pltpu.MemorySpace.SMEM),   # b3 scalar
            ],
            out_specs=pl.BlockSpec((TB, 128), lambda i: (i, 0)),     # lane-dense
        )
        kernel = _disc_kernel_resident
        dims = ("parallel",)
    else:
        grid_spec = pltpu.PrefetchScalarGridSpec(
            num_scalar_prefetch=0,
            grid=(nb, nk),
            in_specs=[
                pl.BlockSpec((TB, TK), lambda i, k: (i, k)),         # x (f32)
                pl.BlockSpec((TK, H1), lambda i, k: (k, 0)),         # w1 tile
                pl.BlockSpec((1, H1), lambda i, k: (0, 0)),          # b1
                pl.BlockSpec((H1, H2), lambda i, k: (0, 0)),         # w2 resident
                pl.BlockSpec((1, H2), lambda i, k: (0, 0)),          # b2
                pl.BlockSpec((1, H2), lambda i, k: (0, 0)),          # w3 row
                pl.BlockSpec(memory_space=pltpu.MemorySpace.SMEM),   # b3 scalar
            ],
            out_specs=pl.BlockSpec((TB, 128), lambda i, k: (i, 0)),  # lane-dense
            scratch_shapes=[pltpu.VMEM((TB, H1), jnp.float32)],      # layer-1 acc
        )
        kernel = _disc_kernel_ktiled
        dims = ("parallel", "arbitrary")

    out = pl.pallas_call(
        kernel,
        out_shape=out_shape,
        grid_spec=grid_spec,
        compiler_params=pltpu.CompilerParams(
            dimension_semantics=dims,
            vmem_limit_bytes=vmem_limit,
        ),
        cost_estimate=cost,
    )(x, w1b, b1r, w2b, b2r, w3r, b3s)

    return out[:B, :1]


# ----------------------------------------------------------------------------
# Params / reference
# ----------------------------------------------------------------------------
def init_params(key, in_features):
    """PyTorch nn.Linear-style init: U[-1/sqrt(fan_in), 1/sqrt(fan_in)]."""
    dims = [(in_features, H1), (H1, H2), (H2, 1)]
    params = []
    for fan_in, fan_out in dims:
        key, kw, kb = jax.random.split(key, 3)
        bound = 1.0 / math.sqrt(float(fan_in))
        w = jax.random.uniform(kw, (fan_in, fan_out), jnp.float32, -bound, bound)
        b = jax.random.uniform(kb, (1, fan_out), jnp.float32, -bound, bound)
        params += [w, b]
    return params


def _reference(img, params):
    """Pure-JAX reference with the same bf16 operand rounding as the kernel."""
    w1, b1, w2, b2, w3, b3 = params
    x = img.reshape(img.shape[0], -1).astype(jnp.bfloat16).astype(jnp.float32)
    w1f = w1.astype(jnp.bfloat16).astype(jnp.float32)
    w2f = w2.astype(jnp.bfloat16).astype(jnp.float32)
    h1 = x @ w1f + b1
    h1 = jnp.maximum(h1, 0.2 * h1)
    h2 = h1.astype(jnp.bfloat16).astype(jnp.float32) @ w2f + b2
    h2 = jnp.maximum(h2, 0.2 * h2)
    return h2 @ w3 + b3.reshape(1, 1)


if __name__ == "__main__":
    key = jax.random.PRNGKey(0)
    k_img, k_par, k_img2, k_par2 = jax.random.split(key, 4)

    # Test 1: img_shape = (1, 16, 16) -> 256 features; resident (degenerate-grid) path.
    B, C, Hs, Ws = 2, 1, 16, 16
    img = jax.random.normal(k_img, (B, C, Hs, Ws), jnp.float32)
    params = init_params(k_par, C * Hs * Ws)
    out = jax.block_until_ready(discriminator_forward(img, params))
    ref = _reference(img, params)
    assert out.shape == (B, 1), out.shape
    assert jnp.allclose(out, ref, atol=1e-2, rtol=1e-2), (out, ref)

    # Test 2: exercise the K-tiled path (512 features, TK=256 -> nk=2).
    B2, C2, Hs2, Ws2 = 4, 2, 16, 16
    img2 = jax.random.normal(k_img2, (B2, C2, Hs2, Ws2), jnp.float32)
    params2 = init_params(k_par2, C2 * Hs2 * Ws2)
    out2 = jax.block_until_ready(
        discriminator_forward(img2, params2, force_k_tile=256))
    ref2 = _reference(img2, params2)
    assert out2.shape == (B2, 1), out2.shape
    assert jnp.allclose(out2, ref2, atol=1e-2, rtol=1e-2), (out2, ref2)

    print("KERNEL_OK")
</pallas_src>

<mosaic_0001>
module attributes {stable_mosaic.version = 11 : i64} {
  func.func @_disc_kernel_resident(%arg0: i32, %arg1: memref<16x256xf32, #tpu.memory_space<vmem>>, %arg2: memref<256x512xbf16, #tpu.memory_space<vmem>>, %arg3: memref<1x512xf32, #tpu.memory_space<vmem>>, %arg4: memref<512x256xbf16, #tpu.memory_space<vmem>>, %arg5: memref<1x256xf32, #tpu.memory_space<vmem>>, %arg6: memref<1x256xf32, #tpu.memory_space<vmem>>, %arg7: memref<1xf32, #tpu.memory_space<smem>>, %arg8: memref<16x128xf32, #tpu.memory_space<vmem>>) attributes {dimension_semantics = [#tpu.dimension_semantics<parallel>], iteration_bounds = array<i64: 1>, scalar_prefetch = 0 : i64, scratch_operands = 0 : i64, tpu.core_type = #tpu.core_type<tc>, window_params = [{transform_indices = @transform_0, window_bounds = array<i64: 16, 256>}, {pipeline_mode = #tpu.pipeline_mode<synchronous>, transform_indices = @transform_1, window_bounds = array<i64: 256, 512>}, {pipeline_mode = #tpu.pipeline_mode<synchronous>, transform_indices = @transform_2, window_bounds = array<i64: 1, 512>}, {pipeline_mode = #tpu.pipeline_mode<synchronous>, transform_indices = @transform_3, window_bounds = array<i64: 512, 256>}, {pipeline_mode = #tpu.pipeline_mode<synchronous>, transform_indices = @transform_4, window_bounds = array<i64: 1, 256>}, {pipeline_mode = #tpu.pipeline_mode<synchronous>, transform_indices = @transform_5, window_bounds = array<i64: 1, 256>}, {transform_indices = @transform_6, window_bounds = array<i64: 1>}, {transform_indices = @transform_7, window_bounds = array<i64: 16, 128>}]} {
    %c0 = arith.constant 0 : index
    %c0_0 = arith.constant 0 : index
    %0 = vector.load %arg1[%c0, %c0_0] : memref<16x256xf32, #tpu.memory_space<vmem>>, vector<16x256xf32>
    %1 = arith.truncf %0 : vector<16x256xf32> to vector<16x256xbf16>
    %c0_1 = arith.constant 0 : index
    %c0_2 = arith.constant 0 : index
    %2 = vector.load %arg2[%c0_1, %c0_2] : memref<256x512xbf16, #tpu.memory_space<vmem>>, vector<256x512xbf16>
    %cst = arith.constant dense<0.000000e+00> : vector<16x512xf32>
    %3 = tpu.matmul %1, %2, %cst {dimension_numbers = #tpu.dot_dimension_numbers<[1], [0], [0], [1], [0, 0, 1, 1], [], []>} : vector<16x256xbf16>, vector<256x512xbf16>, vector<16x512xf32> -> vector<16x512xf32>
    %c0_3 = arith.constant 0 : index
    %c0_4 = arith.constant 0 : index
    %4 = vector.load %arg3[%c0_3, %c0_4] : memref<1x512xf32, #tpu.memory_space<vmem>>, vector<1x512xf32>
    %5 = vector.broadcast %4 : vector<1x512xf32> to vector<16x512xf32>
    %6 = arith.addf %3, %5 : vector<16x512xf32>
    %cst_5 = arith.constant 2.000000e-01 : f32
    %7 = vector.broadcast %cst_5 : f32 to vector<16x512xf32>
    %8 = arith.mulf %7, %6 : vector<16x512xf32>
    %9 = arith.maximumf %6, %8 : vector<16x512xf32>
    %10 = arith.truncf %9 : vector<16x512xf32> to vector<16x512xbf16>
    %c0_6 = arith.constant 0 : index
    %c0_7 = arith.constant 0 : index
    %11 = vector.load %arg4[%c0_6, %c0_7] : memref<512x256xbf16, #tpu.memory_space<vmem>>, vector<512x256xbf16>
    %cst_8 = arith.constant dense<0.000000e+00> : vector<16x256xf32>
    %12 = tpu.matmul %10, %11, %cst_8 {dimension_numbers = #tpu.dot_dimension_numbers<[1], [0], [0], [1], [0, 0, 1, 1], [], []>} : vector<16x512xbf16>, vector<512x256xbf16>, vector<16x256xf32> -> vector<16x256xf32>
    %c0_9 = arith.constant 0 : index
    %c0_10 = arith.constant 0 : index
    %13 = vector.load %arg5[%c0_9, %c0_10] : memref<1x256xf32, #tpu.memory_space<vmem>>, vector<1x256xf32>
    %14 = vector.broadcast %13 : vector<1x256xf32> to vector<16x256xf32>
    %15 = arith.addf %12, %14 : vector<16x256xf32>
    %cst_11 = arith.constant 2.000000e-01 : f32
    %16 = vector.broadcast %cst_11 : f32 to vector<16x256xf32>
    %17 = arith.mulf %16, %15 : vector<16x256xf32>
    %18 = arith.maximumf %15, %17 : vector<16x256xf32>
    %c0_12 = arith.constant 0 : index
    %c0_13 = arith.constant 0 : index
    %19 = vector.load %arg6[%c0_12, %c0_13] : memref<1x256xf32, #tpu.memory_space<vmem>>, vector<1x256xf32>
    %20 = vector.broadcast %19 : vector<1x256xf32> to vector<16x256xf32>
    %21 = arith.mulf %18, %20 : vector<16x256xf32>
    %cst_14 = arith.constant dense<0.000000e+00> : vector<16xf32>
    %22 = vector.multi_reduction <add>, %21, %cst_14 [1] : vector<16x256xf32> to vector<16xf32>
    %23 = vector.shape_cast %22 : vector<16xf32> to vector<16x1xf32>
    %c0_15 = arith.constant 0 : index
    %24 = memref.load %arg7[%c0_15] : memref<1xf32, #tpu.memory_space<smem>>
    %25 = vector.broadcast %24 : f32 to vector<16x1xf32>
    %26 = arith.addf %23, %25 : vector<16x1xf32>
    %27 = vector.shape_cast %26 : vector<16x1xf32> to vector<16x1xf32>
    %28 = vector.broadcast %27 : vector<16x1xf32> to vector<16x128xf32>
    %c0_16 = arith.constant 0 : index
    %c0_17 = arith.constant 0 : index
    %29 = vector.load %arg8[%c0_16, %c0_17] : memref<16x128xf32, #tpu.memory_space<vmem>>, vector<16x128xf32>
    tpu.vector_store %arg8[%c0_16, %c0_17], %28 {strides = array<i32>} : memref<16x128xf32, #tpu.memory_space<vmem>>, vector<16x128xf32>,
    return
  }
  func.func @transform_0(%arg0: i32) -> (i32, i32) {
    %c0_i32 = arith.constant 0 : i32
    %c0_i32_0 = arith.constant 0 : i32
    return %arg0, %c0_i32 : i32, i32
  }
  func.func @transform_1(%arg0: i32) -> (i32, i32) {
    %c0_i32 = arith.constant 0 : i32
    %c0_i32_0 = arith.constant 0 : i32
    %c0_i32_1 = arith.constant 0 : i32
    return %c0_i32, %c0_i32_0 : i32, i32
  }
  func.func @transform_2(%arg0: i32) -> (i32, i32) {
    %c0_i32 = arith.constant 0 : i32
    %c0_i32_0 = arith.constant 0 : i32
    %c0_i32_1 = arith.constant 0 : i32
    return %c0_i32, %c0_i32_0 : i32, i32
  }
  func.func @transform_3(%arg0: i32) -> (i32, i32) {
    %c0_i32 = arith.constant 0 : i32
    %c0_i32_0 = arith.constant 0 : i32
    %c0_i32_1 = arith.constant 0 : i32
    return %c0_i32, %c0_i32_0 : i32, i32
  }
  func.func @transform_4(%arg0: i32) -> (i32, i32) {
    %c0_i32 = arith.constant 0 : i32
    %c0_i32_0 = arith.constant 0 : i32
    %c0_i32_1 = arith.constant 0 : i32
    return %c0_i32, %c0_i32_0 : i32, i32
  }
  func.func @transform_5(%arg0: i32) -> (i32, i32) {
    %c0_i32 = arith.constant 0 : i32
    %c0_i32_0 = arith.constant 0 : i32
    %c0_i32_1 = arith.constant 0 : i32
    return %c0_i32, %c0_i32_0 : i32, i32
  }
  func.func @transform_6(%arg0: i32) -> i32 {
    %c0_i32 = arith.constant 0 : i32
    %c0_i32_0 = arith.constant 0 : i32
    return %c0_i32 : i32
  }
  func.func @transform_7(%arg0: i32) -> (i32, i32) {
    %c0_i32 = arith.constant 0 : i32
    %c0_i32_0 = arith.constant 0 : i32
    return %arg0, %c0_i32 : i32, i32
  }
}

</mosaic_0001>

<llo_original>
// kernel: tpu_custom_call.1
$region0: #{tpu_custom_call.1}
  #allocation0 [shape = 'u32[]', space=smem, size = 0x4, offset = 0x4, fixed_abs, tag = 'smem constant byte address 0x4 - core index']
  #allocation1 [shape = 'u32[72,128]{1,0:T(1,128)}', space=vmem, size = 0x9000, scoped, tag = 'internal scratch']
  #allocation2 [shape = 'f32[1]{0:T(128)S(6)}', space=smem, size = 0x200, scoped, tag = 'scoped memory for tpu_custom_call.1']
  %s0 = inlined_call_operand.hbm [shape: f32[16,256], index: 0, kind: input, shape index: {}]
  %s1 = inlined_call_operand.hbm [shape: bf16[256,512], index: 1, kind: input, shape index: {}]
  %s2 = inlined_call_operand.hbm [shape: f32[1,512], index: 2, kind: input, shape index: {}]
  %s3 = inlined_call_operand.hbm [shape: bf16[512,256], index: 3, kind: input, shape index: {}]
  %s4 = inlined_call_operand.vmem [shape: f32[1,256], index: 4, kind: input, shape index: {}]
  %s5 = inlined_call_operand.vmem [shape: f32[1,256], index: 5, kind: input, shape index: {}]
  %s6 = inlined_call_operand.<no memory space> [shape: f32[1], index: 6, kind: input, shape index: {}]
  %s7 = inlined_call_operand.hbm [shape: f32[16,128], index: 7, kind: output, shape index: {}]
  %s8 = sld [smem:[#allocation0]]
  $region54: #{tpu_custom_call.1} parent=0
    _
  %s10 = ssub.s32 1, %s8
  %s11 = scalar_select 0, %s10, %s8
  %12 = sst [smem:[#allocation2]] %s6
  $region1: #{tpu_custom_call.1} parent=0
    #allocation3 [shape = 'u8[16384]{0}', space=vmem, size = 0x4000, scoped, tag = 'input window, operand 0, single buffered']
    #allocation4 [shape = 's32[1]{0}', space=sflag, size = 0x4, scoped, tag = 'scoped memory for tpu_custom_call.1']
    #allocation5 [shape = 's32[1]{0}', space=sflag, size = 0x4, scoped, tag = 'scoped memory for tpu_custom_call.1']
    #allocation6 [shape = 'u8[262144]{0}', space=vmem, size = 0x40000, scoped, tag = 'input window, operand 1, single buffered']
    #allocation7 [shape = 's32[1]{0}', space=sflag, size = 0x4, scoped, tag = 'scoped memory for tpu_custom_call.1']
    #allocation8 [shape = 'u8[2048]{0}', space=vmem, size = 0x800, scoped, tag = 'input window, operand 2, single buffered']
    #allocation9 [shape = 'u8[262144]{0}', space=vmem, size = 0x40000, scoped, tag = 'input window, operand 3, single buffered']
    #allocation10 [shape = 's32[1]{0}', space=sflag, size = 0x4, scoped, tag = 'scoped memory for tpu_custom_call.1']
    #allocation11 [shape = 'u8[8192]{0}', space=vmem, size = 0x2000, scoped, tag = 'output window, operand 0, single buffered']
    %13 = vsyncpa [#allocation4], 0
    %14 = vsyncpa [#allocation7], 0
    %15 = vsyncpa [#allocation10], 0
    %16 = vsyncpa [#allocation5], 0
    // Predicated region
    $region2: #{tpu_custom_call.1} parent=1 // pred_check
      _
    $region3: #{tpu_custom_call.1} parent=1 // pred_check_branch
      %18 = sbr.rel (0) target = $region5
    $region4: #{tpu_custom_call.1} parent=1 // pred_region
      %20 = vsyncadd [#allocation4], 0
      %s21 = sshll.u32 %s0, 4
      %s22 = int_to_ptr.hbm [resolvable:$true] %s21
      %s23 = sshll.u32 [#allocation3], 4
      %s24 = int_to_ptr.vmem [resolvable:$true] %s23
      %29 = dma.hbm_to_vmem [thread:$0]  %s22, 512, %s24, [#allocation4], 256, 256, 16
    $region5: #{tpu_custom_call.1} parent=1 // pred_fallthru
      _
    // Predicated region
    $region6: #{tpu_custom_call.1} parent=1 // pred_check
      _
    $region7: #{tpu_custom_call.1} parent=1 // pred_check_branch
      %31 = sbr.rel (0) target = $region9
    $region8: #{tpu_custom_call.1} parent=1 // pred_region
      %33 = vsyncadd [#allocation7], 0
      %s34 = sshll.u32 %s1, 4
      %s35 = int_to_ptr.hbm [resolvable:$true] %s34
      %s36 = sshll.u32 [#allocation6], 4
      %s37 = int_to_ptr.vmem [resolvable:$true] %s36
      %42 = dma.hbm_to_vmem [thread:$0]  %s35, 8192, %s37, [#allocation7], 256, 256, 16
    $region9: #{tpu_custom_call.1} parent=1 // pred_fallthru
      _
    // Predicated region
    $region10: #{tpu_custom_call.1} parent=1 // pred_check
      _
    $region11: #{tpu_custom_call.1} parent=1 // pred_check_branch
      %44 = sbr.rel (0) target = $region13
    $region12: #{tpu_custom_call.1} parent=1 // pred_region
      %46 = vsyncadd [#allocation7], 0
      %s48 = sshll.u32 %s2, 4
      %s49 = int_to_ptr.hbm [resolvable:$true] %s48
      %s50 = sshll.u32 [#allocation8], 4
      %s51 = int_to_ptr.vmem [resolvable:$true] %s50
      %53 = dma.hbm_to_vmem [thread:$0]  %s49, 64, %s51, [#allocation7]
    $region13: #{tpu_custom_call.1} parent=1 // pred_fallthru
      _
    // Predicated region
    $region14: #{tpu_custom_call.1} parent=1 // pred_check
      _
    $region15: #{tpu_custom_call.1} parent=1 // pred_check_branch
      %55 = sbr.rel (0) target = $region17
    $region16: #{tpu_custom_call.1} parent=1 // pred_region
      %57 = vsyncadd [#allocation10], 0
      %s58 = sshll.u32 %s3, 4
      %s59 = int_to_ptr.hbm [resolvable:$true] %s58
      %s60 = sshll.u32 [#allocation9], 4
      %s61 = int_to_ptr.vmem [resolvable:$true] %s60
      %66 = dma.hbm_to_vmem [thread:$0]  %s59, 8192, %s61, [#allocation10], 128, 128, 8
    $region17: #{tpu_custom_call.1} parent=1 // pred_fallthru
      _
    // Predicated region
    $region18: #{tpu_custom_call.1} parent=1 // pred_check
      _
    $region19: #{tpu_custom_call.1} parent=1 // pred_check_branch
      %68 = sbr.rel (0) target = $region21
    $region20: #{tpu_custom_call.1} parent=1 // pred_region
      _
    $region21: #{tpu_custom_call.1} parent=1 // pred_fallthru
      _
    // Predicated region
    $region22: #{tpu_custom_call.1} parent=1 // pred_check
      _
    $region23: #{tpu_custom_call.1} parent=1 // pred_check_branch
      %70 = sbr.rel (0) target = $region25
    $region24: #{tpu_custom_call.1} parent=1 // pred_region
      _
    $region25: #{tpu_custom_call.1} parent=1 // pred_fallthru
      _
    // Predicated region
    $region26: #{tpu_custom_call.1} parent=1 // pred_check
      _
    $region27: #{tpu_custom_call.1} parent=1 // pred_check_branch
      %72 = sbr.rel (0) target = $region29
    $region28: #{tpu_custom_call.1} parent=1 // pred_region
      _
    $region29: #{tpu_custom_call.1} parent=1 // pred_fallthru
      _
    // Predicated region
    $region30: #{tpu_custom_call.1} parent=1 // pred_check
      _
    $region31: #{tpu_custom_call.1} parent=1 // pred_check_branch
      %74 = sbr.rel (0) target = $region33
    $region32: #{tpu_custom_call.1} parent=1 // pred_region
      %76 = dma.done [#allocation4], 512
    $region33: #{tpu_custom_call.1} parent=1 // pred_fallthru
      _
    // Predicated region
    $region34: #{tpu_custom_call.1} parent=1 // pred_check
      _
    $region35: #{tpu_custom_call.1} parent=1 // pred_check_branch
      %78 = sbr.rel (0) target = $region37
    $region36: #{tpu_custom_call.1} parent=1 // pred_region
      %80 = dma.done [#allocation7], 8192
    $region37: #{tpu_custom_call.1} parent=1 // pred_fallthru
      _
    // Predicated region
    $region38: #{tpu_custom_call.1} parent=1 // pred_check
      _
    $region39: #{tpu_custom_call.1} parent=1 // pred_check_branch
      %82 = sbr.rel (0) target = $region41
    $region40: #{tpu_custom_call.1} parent=1 // pred_region
      %84 = dma.done [#allocation7], 64
    $region41: #{tpu_custom_call.1} parent=1 // pred_fallthru
      _
    // Predicated region
    $region42: #{tpu_custom_call.1} parent=1 // pred_check
      _
    $region43: #{tpu_custom_call.1} parent=1 // pred_check_branch
      %86 = sbr.rel (0) target = $region45
    $region44: #{tpu_custom_call.1} parent=1 // pred_region
      %88 = dma.done [#allocation10], 8192
    $region45: #{tpu_custom_call.1} parent=1 // pred_fallthru
      _
    %v89 = vld [vmem:[#allocation3] sm:$0xff]
    %v90 = vld [vmem:[#allocation3 + $0x8] sm:$0xff]
    %v91 = vld [vmem:[#allocation3 + $0x10] sm:$0xff]
    %v92 = vld [vmem:[#allocation3 + $0x18] sm:$0xff]
    %v93 = vpack.c.bf16 %v91, %v89
    %v94 = vpack.c.bf16 %v92, %v90
    %v95 = vld [vmem:[#allocation6] sm:$0xff]
    %v96 = vld [vmem:[#allocation6 + $0x8] sm:$0xff]
    %v97 = vld [vmem:[#allocation6 + $0x10] sm:$0xff]
    %v98 = vld [vmem:[#allocation6 + $0x18] sm:$0xff]
    %v99 = vld [vmem:[#allocation6 + $0x20] sm:$0xff]
    %v100 = vld [vmem:[#allocation6 + $0x28] sm:$0xff]
    %v101 = vld [vmem:[#allocation6 + $0x30] sm:$0xff]
    %v102 = vld [vmem:[#allocation6 + $0x38] sm:$0xff]
    %v103 = vld [vmem:[#allocation6 + $0x40] sm:$0xff]
    %v104 = vld [vmem:[#allocation6 + $0x48] sm:$0xff]
    %v105 = vld [vmem:[#allocation6 + $0x50] sm:$0xff]
    %v106 = vld [vmem:[#allocation6 + $0x58] sm:$0xff]
    %v107 = vld [vmem:[#allocation6 + $0x60] sm:$0xff]
    %v108 = vld [vmem:[#allocation6 + $0x68] sm:$0xff]
    %v109 = vld [vmem:[#allocation6 + $0x70] sm:$0xff]
    %v110 = vld [vmem:[#allocation6 + $0x78] sm:$0xff]
    %v111 = vld [vmem:[#allocation6 + $0x80] sm:$0xff]
    %v112 = vld [vmem:[#allocation6 + $0x88] sm:$0xff]
    %v113 = vld [vmem:[#allocation6 + $0x90] sm:$0xff]
    %v114 = vld [vmem:[#allocation6 + $0x98] sm:$0xff]
    %v115 = vld [vmem:[#allocation6 + $0xa0] sm:$0xff]
    %v116 = vld [vmem:[#allocation6 + $0xa8] sm:$0xff]
    %v117 = vld [vmem:[#allocation6 + $0xb0] sm:$0xff]
    %v118 = vld [vmem:[#allocation6 + $0xb8] sm:$0xff]
    %v119 = vld [vmem:[#allocation6 + $0xc0] sm:$0xff]
    %v120 = vld [vmem:[#allocation6 + $0xc8] sm:$0xff]
    %v121 = vld [vmem:[#allocation6 + $0xd0] sm:$0xff]
    %v122 = vld [vmem:[#allocation6 + $0xd8] sm:$0xff]
    %v123 = vld [vmem:[#allocation6 + $0xe0] sm:$0xff]
    %v124 = vld [vmem:[#allocation6 + $0xe8] sm:$0xff]
    %v125 = vld [vmem:[#allocation6 + $0xf0] sm:$0xff]
    %v126 = vld [vmem:[#allocation6 + $0xf8] sm:$0xff]
    %v127 = vld [vmem:[#allocation6 + $0x100] sm:$0xff]
    %v128 = vld [vmem:[#allocation6 + $0x108] sm:$0xff]
    %v129 = vld [vmem:[#allocation6 + $0x110] sm:$0xff]
    %v130 = vld [vmem:[#allocation6 + $0x118] sm:$0xff]
    %v131 = vld [vmem:[#allocation6 + $0x120] sm:$0xff]
    %v132 = vld [vmem:[#allocation6 + $0x128] sm:$0xff]
    %v133 = vld [vmem:[#allocation6 + $0x130] sm:$0xff]
    %v134 = vld [vmem:[#allocation6 + $0x138] sm:$0xff]
    %v135 = vld [vmem:[#allocation6 + $0x140] sm:$0xff]
    %v136 = vld [vmem:[#allocation6 + $0x148] sm:$0xff]
    %v137 = vld [vmem:[#allocation6 + $0x150] sm:$0xff]
    %v138 = vld [vmem:[#allocation6 + $0x158] sm:$0xff]
    %v139 = vld [vmem:[#allocation6 + $0x160] sm:$0xff]
    %v140 = vld [vmem:[#allocation6 + $0x168] sm:$0xff]
    %v141 = vld [vmem:[#allocation6 + $0x170] sm:$0xff]
    %v142 = vld [vmem:[#allocation6 + $0x178] sm:$0xff]
    %v143 = vld [vmem:[#allocation6 + $0x180] sm:$0xff]
    %v144 = vld [vmem:[#allocation6 + $0x188] sm:$0xff]
    %v145 = vld [vmem:[#allocation6 + $0x190] sm:$0xff]
    %v146 = vld [vmem:[#allocation6 + $0x198] sm:$0xff]
    %v147 = vld [vmem:[#allocation6 + $0x1a0] sm:$0xff]
    %v148 = vld [vmem:[#allocation6 + $0x1a8] sm:$0xff]
    %v149 = vld [vmem:[#allocation6 + $0x1b0] sm:$0xff]
    %v150 = vld [vmem:[#allocation6 + $0x1b8] sm:$0xff]
    %v151 = vld [vmem:[#allocation6 + $0x1c0] sm:$0xff]
    %v152 = vld [vmem:[#allocation6 + $0x1c8] sm:$0xff]
    %v153 = vld [vmem:[#allocation6 + $0x1d0] sm:$0xff]
    %v154 = vld [vmem:[#allocation6 + $0x1d8] sm:$0xff]
    %v155 = vld [vmem:[#allocation6 + $0x1e0] sm:$0xff]
    %v156 = vld [vmem:[#allocation6 + $0x1e8] sm:$0xff]
    %v157 = vld [vmem:[#allocation6 + $0x1f0] sm:$0xff]
    %v158 = vld [vmem:[#allocation6 + $0x1f8] sm:$0xff]
    %v159 = vld [vmem:[#allocation8] sm:$0xf]
    %v161 = vperm.slane %v159, 0
    %v162 = vperm.slane %v159, 1
    %v163 = vperm.slane %v159, 2
    %v164 = vperm.slane %v159, 3
    %v233 = vunpack.c.l.b16 %v95
    %v234 = vunpack.c.h.b16 %v95
    %v235 = vunpack.c.l.b16 %v96
    %v236 = vunpack.c.h.b16 %v96
    %v237 = vunpack.c.l.b16 %v97
    %v238 = vunpack.c.h.b16 %v97
    %v239 = vunpack.c.l.b16 %v98
    %v240 = vunpack.c.h.b16 %v98
    %v241 = vunpack.c.l.b16 %v99
    %v242 = vunpack.c.h.b16 %v99
    %v243 = vunpack.c.l.b16 %v100
    %v244 = vunpack.c.h.b16 %v100
    %v245 = vunpack.c.l.b16 %v101
    %v246 = vunpack.c.h.b16 %v101
    %v247 = vunpack.c.l.b16 %v102
    %v248 = vunpack.c.h.b16 %v102
    %v249 = vunpack.c.l.b16 %v103
    %v250 = vunpack.c.h.b16 %v103
    %v251 = vunpack.c.l.b16 %v104
    %v252 = vunpack.c.h.b16 %v104
    %v253 = vunpack.c.l.b16 %v105
    %v254 = vunpack.c.h.b16 %v105
    %v255 = vunpack.c.l.b16 %v106
    %v256 = vunpack.c.h.b16 %v106
    %v257 = vunpack.c.l.b16 %v107
    %v258 = vunpack.c.h.b16 %v107
    %v259 = vunpack.c.l.b16 %v108
    %v260 = vunpack.c.h.b16 %v108
    %v261 = vunpack.c.l.b16 %v109
    %v262 = vunpack.c.h.b16 %v109
    %v263 = vunpack.c.l.b16 %v110
    %v264 = vunpack.c.h.b16 %v110
    %v265 = vunpack.c.l.b16 %v111
    %v266 = vunpack.c.h.b16 %v111
    %v267 = vunpack.c.l.b16 %v112
    %v268 = vunpack.c.h.b16 %v112
    %v269 = vunpack.c.l.b16 %v113
    %v270 = vunpack.c.h.b16 %v113
    %v271 = vunpack.c.l.b16 %v114
    %v272 = vunpack.c.h.b16 %v114
    %v273 = vunpack.c.l.b16 %v115
    %v274 = vunpack.c.h.b16 %v115
    %v275 = vunpack.c.l.b16 %v116
    %v276 = vunpack.c.h.b16 %v116
    %v277 = vunpack.c.l.b16 %v117
    %v278 = vunpack.c.h.b16 %v117
    %v279 = vunpack.c.l.b16 %v118
    %v280 = vunpack.c.h.b16 %v118
    %v281 = vunpack.c.l.b16 %v119
    %v282 = vunpack.c.h.b16 %v119
    %v283 = vunpack.c.l.b16 %v120
    %v284 = vunpack.c.h.b16 %v120
    %v285 = vunpack.c.l.b16 %v121
    %v286 = vunpack.c.h.b16 %v121
    %v287 = vunpack.c.l.b16 %v122
    %v288 = vunpack.c.h.b16 %v122
    %v289 = vunpack.c.l.b16 %v123
    %v290 = vunpack.c.h.b16 %v123
    %v291 = vunpack.c.l.b16 %v124
    %v292 = vunpack.c.h.b16 %v124
    %v293 = vunpack.c.l.b16 %v125
    %v294 = vunpack.c.h.b16 %v125
    %v295 = vunpack.c.l.b16 %v126
    %v296 = vunpack.c.h.b16 %v126
    %v297 = vunpack.c.l.b16 %v127
    %v298 = vunpack.c.h.b16 %v127
    %v299 = vunpack.c.l.b16 %v128
    %v300 = vunpack.c.h.b16 %v128
    %v301 = vunpack.c.l.b16 %v129
    %v302 = vunpack.c.h.b16 %v129
    %v303 = vunpack.c.l.b16 %v130
    %v304 = vunpack.c.h.b16 %v130
    %v305 = vunpack.c.l.b16 %v131
    %v306 = vunpack.c.h.b16 %v131
    %v307 = vunpack.c.l.b16 %v132
    %v308 = vunpack.c.h.b16 %v132
    %v309 = vunpack.c.l.b16 %v133
    %v310 = vunpack.c.h.b16 %v133
    %v311 = vunpack.c.l.b16 %v134
    %v312 = vunpack.c.h.b16 %v134
    %v313 = vunpack.c.l.b16 %v135
    %v314 = vunpack.c.h.b16 %v135
    %v315 = vunpack.c.l.b16 %v136
    %v316 = vunpack.c.h.b16 %v136
    %v317 = vunpack.c.l.b16 %v137
    %v318 = vunpack.c.h.b16 %v137
    %v319 = vunpack.c.l.b16 %v138
    %v320 = vunpack.c.h.b16 %v138
    %v321 = vunpack.c.l.b16 %v139
    %v322 = vunpack.c.h.b16 %v139
    %v323 = vunpack.c.l.b16 %v140
    %v324 = vunpack.c.h.b16 %v140
    %v325 = vunpack.c.l.b16 %v141
    %v326 = vunpack.c.h.b16 %v141
    %v327 = vunpack.c.l.b16 %v142
    %v328 = vunpack.c.h.b16 %v142
    %v329 = vunpack.c.l.b16 %v143
    %v330 = vunpack.c.h.b16 %v143
    %v331 = vunpack.c.l.b16 %v144
    %v332 = vunpack.c.h.b16 %v144
    %v333 = vunpack.c.l.b16 %v145
    %v334 = vunpack.c.h.b16 %v145
    %v335 = vunpack.c.l.b16 %v146
    %v336 = vunpack.c.h.b16 %v146
    %v337 = vunpack.c.l.b16 %v147
    %v338 = vunpack.c.h.b16 %v147
    %v339 = vunpack.c.l.b16 %v148
    %v340 = vunpack.c.h.b16 %v148
    %v341 = vunpack.c.l.b16 %v149
    %v342 = vunpack.c.h.b16 %v149
    %v343 = vunpack.c.l.b16 %v150
    %v344 = vunpack.c.h.b16 %v150
    %v345 = vunpack.c.l.b16 %v151
    %v346 = vunpack.c.h.b16 %v151
    %v347 = vunpack.c.l.b16 %v152
    %v348 = vunpack.c.h.b16 %v152
    %v349 = vunpack.c.l.b16 %v153
    %v350 = vunpack.c.h.b16 %v153
    %v351 = vunpack.c.l.b16 %v154
    %v352 = vunpack.c.h.b16 %v154
    %v353 = vunpack.c.l.b16 %v155
    %v354 = vunpack.c.h.b16 %v155
    %v355 = vunpack.c.l.b16 %v156
    %v356 = vunpack.c.h.b16 %v156
    %v357 = vunpack.c.l.b16 %v157
    %v358 = vunpack.c.h.b16 %v157
    %v359 = vunpack.c.l.b16 %v158
    %v360 = vunpack.c.h.b16 %v158
    %v361 = vpack.c.b16 %v237, %v233
    %v362 = vpack.c.b16 %v238, %v234
    %v363 = vpack.c.b16 %v239, %v235
    %v364 = vpack.c.b16 %v240, %v236
    %v365 = vpack.c.b16 %v245, %v241
    %v366 = vpack.c.b16 %v246, %v242
    %v367 = vpack.c.b16 %v247, %v243
    %v368 = vpack.c.b16 %v248, %v244
    %v369 = vpack.c.b16 %v253, %v249
    %v370 = vpack.c.b16 %v254, %v250
    %v371 = vpack.c.b16 %v255, %v251
    %v372 = vpack.c.b16 %v256, %v252
    %v373 = vpack.c.b16 %v261, %v257
    %v374 = vpack.c.b16 %v262, %v258
    %v375 = vpack.c.b16 %v263, %v259
    %v376 = vpack.c.b16 %v264, %v260
    %v377 = vpack.c.b16 %v269, %v265
    %v378 = vpack.c.b16 %v270, %v266
    %v379 = vpack.c.b16 %v271, %v267
    %v380 = vpack.c.b16 %v272, %v268
    %v381 = vpack.c.b16 %v277, %v273
    %v382 = vpack.c.b16 %v278, %v274
    %v383 = vpack.c.b16 %v279, %v275
    %v384 = vpack.c.b16 %v280, %v276
    %v385 = vpack.c.b16 %v285, %v281
    %v386 = vpack.c.b16 %v286, %v282
    %v387 = vpack.c.b16 %v287, %v283
    %v388 = vpack.c.b16 %v288, %v284
    %v389 = vpack.c.b16 %v293, %v289
    %v390 = vpack.c.b16 %v294, %v290
    %v391 = vpack.c.b16 %v295, %v291
    %v392 = vpack.c.b16 %v296, %v292
    %v393 = vpack.c.b16 %v301, %v297
    %v394 = vpack.c.b16 %v302, %v298
    %v395 = vpack.c.b16 %v303, %v299
    %v396 = vpack.c.b16 %v304, %v300
    %v397 = vpack.c.b16 %v309, %v305
    %v398 = vpack.c.b16 %v310, %v306
    %v399 = vpack.c.b16 %v311, %v307
    %v400 = vpack.c.b16 %v312, %v308
    %v401 = vpack.c.b16 %v317, %v313
    %v402 = vpack.c.b16 %v318, %v314
    %v403 = vpack.c.b16 %v319, %v315
    %v404 = vpack.c.b16 %v320, %v316
    %v405 = vpack.c.b16 %v325, %v321
    %v406 = vpack.c.b16 %v326, %v322
    %v407 = vpack.c.b16 %v327, %v323
    %v408 = vpack.c.b16 %v328, %v324
    %v409 = vpack.c.b16 %v333, %v329
    %v410 = vpack.c.b16 %v334, %v330
    %v411 = vpack.c.b16 %v335, %v331
    %v412 = vpack.c.b16 %v336, %v332
    %v413 = vpack.c.b16 %v341, %v337
    %v414 = vpack.c.b16 %v342, %v338
    %v415 = vpack.c.b16 %v343, %v339
    %v416 = vpack.c.b16 %v344, %v340
    %v417 = vpack.c.b16 %v349, %v345
    %v418 = vpack.c.b16 %v350, %v346
    %v419 = vpack.c.b16 %v351, %v347
    %v420 = vpack.c.b16 %v352, %v348
    %v421 = vpack.c.b16 %v357, %v353
    %v422 = vpack.c.b16 %v358, %v354
    %v423 = vpack.c.b16 %v359, %v355
    %v424 = vpack.c.b16 %v360, %v356
    %489 = vmatpush.bf16.msra.mxu0 %v389
    %490 = vmatpush.bf16.msra.mxu0 %v385
    %491 = vmatpush.bf16.msra.mxu0 %v381
    %492 = vmatpush.bf16.msra.mxu0 %v377
    %493 = vmatpush.bf16.msra.mxu0 %v373
    %494 = vmatpush.bf16.msra.mxu0 %v369
    %495 = vmatpush.bf16.msra.mxu0 %v365
    %496 = vmatpush.bf16.msra.mxu0 %v361
    %497 = vmatmul.bf16.gmra.mxu0 %v93
    %v498 = vpop.f32.mrf.mxu0
    %v499 = vadd.f32 %v161, %v498
    %v500 = vpop.f32.mrf.mxu0
    %v501 = vadd.f32 %v161, %v500
    %502 = vdwg.mxu0
    %503 = vmatpush.bf16.msra.mxu0 %v421
    %504 = vmatpush.bf16.msra.mxu0 %v417
    %505 = vmatpush.bf16.msra.mxu0 %v413
    %506 = vmatpush.bf16.msra.mxu0 %v409
    %507 = vmatpush.bf16.msra.mxu0 %v405
    %508 = vmatpush.bf16.msra.mxu0 %v401
    %509 = vmatpush.bf16.msra.mxu0 %v397
    %510 = vmatpush.bf16.msra.mxu0 %v393
    %511 = vmatmul.bf16.gmra.mxu0 %v94
    %v512 = vpop.f32.mrf.mxu0
    %v513 = vadd.f32 %v499, %v512
    %v514 = vpop.f32.mrf.mxu0
    %v515 = vadd.f32 %v501, %v514
    %516 = vdwg.mxu0
    %517 = vmatpush.bf16.msra.mxu0 %v390
    %518 = vmatpush.bf16.msra.mxu0 %v386
    %519 = vmatpush.bf16.msra.mxu0 %v382
    %520 = vmatpush.bf16.msra.mxu0 %v378
    %521 = vmatpush.bf16.msra.mxu0 %v374
    %522 = vmatpush.bf16.msra.mxu0 %v370
    %523 = vmatpush.bf16.msra.mxu0 %v366
    %524 = vmatpush.bf16.msra.mxu0 %v362
    %525 = vmatmul.bf16.gmra.mxu0 %v93
    %v526 = vpop.f32.mrf.mxu0
    %v527 = vadd.f32 %v162, %v526
    %v528 = vpop.f32.mrf.mxu0
    %v529 = vadd.f32 %v162, %v528
    %530 = vdwg.mxu0
    %531 = vmatpush.bf16.msra.mxu0 %v422
    %532 = vmatpush.bf16.msra.mxu0 %v418
    %533 = vmatpush.bf16.msra.mxu0 %v414
    %534 = vmatpush.bf16.msra.mxu0 %v410
    %535 = vmatpush.bf16.msra.mxu0 %v406
    %536 = vmatpush.bf16.msra.mxu0 %v402
    %537 = vmatpush.bf16.msra.mxu0 %v398
    %538 = vmatpush.bf16.msra.mxu0 %v394
    %539 = vmatmul.bf16.gmra.mxu0 %v94
    %v540 = vpop.f32.mrf.mxu0
    %v541 = vadd.f32 %v527, %v540
    %v542 = vpop.f32.mrf.mxu0
    %v543 = vadd.f32 %v529, %v542
    %544 = vdwg.mxu0
    %545 = vmatpush.bf16.msra.mxu0 %v391
    %546 = vmatpush.bf16.msra.mxu0 %v387
    %547 = vmatpush.bf16.msra.mxu0 %v383
    %548 = vmatpush.bf16.msra.mxu0 %v379
    %549 = vmatpush.bf16.msra.mxu0 %v375
    %550 = vmatpush.bf16.msra.mxu0 %v371
    %551 = vmatpush.bf16.msra.mxu0 %v367
    %552 = vmatpush.bf16.msra.mxu0 %v363
    %553 = vmatmul.bf16.gmra.mxu0 %v93
    %v554 = vpop.f32.mrf.mxu0
    %v555 = vadd.f32 %v163, %v554
    %v556 = vpop.f32.mrf.mxu0
    %v557 = vadd.f32 %v163, %v556
    %558 = vdwg.mxu0
    %559 = vmatpush.bf16.msra.mxu0 %v423
    %560 = vmatpush.bf16.msra.mxu0 %v419
    %561 = vmatpush.bf16.msra.mxu0 %v415
    %562 = vmatpush.bf16.msra.mxu0 %v411
    %563 = vmatpush.bf16.msra.mxu0 %v407
    %564 = vmatpush.bf16.msra.mxu0 %v403
    %565 = vmatpush.bf16.msra.mxu0 %v399
    %566 = vmatpush.bf16.msra.mxu0 %v395
    %567 = vmatmul.bf16.gmra.mxu0 %v94
    %v568 = vpop.f32.mrf.mxu0
    %v569 = vadd.f32 %v555, %v568
    %v570 = vpop.f32.mrf.mxu0
    %v571 = vadd.f32 %v557, %v570
    %572 = vdwg.mxu0
    %573 = vmatpush.bf16.msra.mxu0 %v392
    %574 = vmatpush.bf16.msra.mxu0 %v388
    %575 = vmatpush.bf16.msra.mxu0 %v384
    %576 = vmatpush.bf16.msra.mxu0 %v380
    %577 = vmatpush.bf16.msra.mxu0 %v376
    %578 = vmatpush.bf16.msra.mxu0 %v372
    %579 = vmatpush.bf16.msra.mxu0 %v368
    %580 = vmatpush.bf16.msra.mxu0 %v364
    %581 = vmatmul.bf16.gmra.mxu0 %v93
    %v582 = vpop.f32.mrf.mxu0
    %v583 = vadd.f32 %v164, %v582
    %v584 = vpop.f32.mrf.mxu0
    %v585 = vadd.f32 %v164, %v584
    %586 = vdwg.mxu0
    %587 = vmatpush.bf16.msra.mxu0 %v424
    %588 = vmatpush.bf16.msra.mxu0 %v420
    %589 = vmatpush.bf16.msra.mxu0 %v416
    %590 = vmatpush.bf16.msra.mxu0 %v412
    %591 = vmatpush.bf16.msra.mxu0 %v408
    %592 = vmatpush.bf16.msra.mxu0 %v404
    %593 = vmatpush.bf16.msra.mxu0 %v400
    %594 = vmatpush.bf16.msra.mxu0 %v396
    %595 = vmatmul.bf16.gmra.mxu0 %v94
    %v596 = vpop.f32.mrf.mxu0
    %v597 = vadd.f32 %v583, %v596
    %v598 = vpop.f32.mrf.mxu0
    %v599 = vadd.f32 %v585, %v598
    %600 = vdwg.mxu0
    %v601 = vmul.f32 %v513, 0.2
    %v602 = vmul.f32 %v541, 0.2
    %v603 = vmul.f32 %v569, 0.2
    %v604 = vmul.f32 %v597, 0.2
    %v605 = vmul.f32 %v515, 0.2
    %v606 = vmul.f32 %v543, 0.2
    %v607 = vmul.f32 %v571, 0.2
    %v608 = vmul.f32 %v599, 0.2
    %v609 = vmax.f32 %v513, %v601
    %v610 = vmax.f32 %v541, %v602
    %v611 = vmax.f32 %v569, %v603
    %v612 = vmax.f32 %v597, %v604
    %v613 = vmax.f32 %v515, %v605
    %v614 = vmax.f32 %v543, %v606
    %v615 = vmax.f32 %v571, %v607
    %v616 = vmax.f32 %v599, %v608
    %v617 = vpack.c.bf16 %v613, %v609
    %v618 = vpack.c.bf16 %v614, %v610
    %v619 = vpack.c.bf16 %v615, %v611
    %v620 = vpack.c.bf16 %v616, %v612
    %v621 = vld [vmem:[#allocation9] sm:$0xff]
    %v622 = vld [vmem:[#allocation9 + $0x8] sm:$0xff]
    %v623 = vld [vmem:[#allocation9 + $0x10] sm:$0xff]
    %v624 = vld [vmem:[#allocation9 + $0x18] sm:$0xff]
    %v625 = vld [vmem:[#allocation9 + $0x20] sm:$0xff]
    %v626 = vld [vmem:[#allocation9 + $0x28] sm:$0xff]
    %v627 = vld [vmem:[#allocation9 + $0x30] sm:$0xff]
    %v628 = vld [vmem:[#allocation9 + $0x38] sm:$0xff]
    %v629 = vld [vmem:[#allocation9 + $0x40] sm:$0xff]
    %v630 = vld [vmem:[#allocation9 + $0x48] sm:$0xff]
    %v631 = vld [vmem:[#allocation9 + $0x50] sm:$0xff]
    %v632 = vld [vmem:[#allocation9 + $0x58] sm:$0xff]
    %v633 = vld [vmem:[#allocation9 + $0x60] sm:$0xff]
    %v634 = vld [vmem:[#allocation9 + $0x68] sm:$0xff]
    %v635 = vld [vmem:[#allocation9 + $0x70] sm:$0xff]
    %v636 = vld [vmem:[#allocation9 + $0x78] sm:$0xff]
    %v637 = vld [vmem:[#allocation9 + $0x80] sm:$0xff]
    %v638 = vld [vmem:[#allocation9 + $0x88] sm:$0xff]
    %v639 = vld [vmem:[#allocation9 + $0x90] sm:$0xff]
    %v640 = vld [vmem:[#allocation9 + $0x98] sm:$0xff]
    %v641 = vld [vmem:[#allocation9 + $0xa0] sm:$0xff]
    %v642 = vld [vmem:[#allocation9 + $0xa8] sm:$0xff]
    %v643 = vld [vmem:[#allocation9 + $0xb0] sm:$0xff]
    %v644 = vld [vmem:[#allocation9 + $0xb8] sm:$0xff]
    %v645 = vld [vmem:[#allocation9 + $0xc0] sm:$0xff]
    %v646 = vld [vmem:[#allocation9 + $0xc8] sm:$0xff]
    %v647 = vld [vmem:[#allocation9 + $0xd0] sm:$0xff]
    %v648 = vld [vmem:[#allocation9 + $0xd8] sm:$0xff]
    %v649 = vld [vmem:[#allocation9 + $0xe0] sm:$0xff]
    %v650 = vld [vmem:[#allocation9 + $0xe8] sm:$0xff]
    %v651 = vld [vmem:[#allocation9 + $0xf0] sm:$0xff]
    %v652 = vld [vmem:[#allocation9 + $0xf8] sm:$0xff]
    %v653 = vld [vmem:[#allocation9 + $0x100] sm:$0xff]
    %v654 = vld [vmem:[#allocation9 + $0x108] sm:$0xff]
    %v655 = vld [vmem:[#allocation9 + $0x110] sm:$0xff]
    %v656 = vld [vmem:[#allocation9 + $0x118] sm:$0xff]
    %v657 = vld [vmem:[#allocation9 + $0x120] sm:$0xff]
    %v658 = vld [vmem:[#allocation9 + $0x128] sm:$0xff]
    %v659 = vld [vmem:[#allocation9 + $0x130] sm:$0xff]
    %v660 = vld [vmem:[#allocation9 + $0x138] sm:$0xff]
    %v661 = vld [vmem:[#allocation9 + $0x140] sm:$0xff]
    %v662 = vld [vmem:[#allocation9 + $0x148] sm:$0xff]
    %v663 = vld [vmem:[#allocation9 + $0x150] sm:$0xff]
    %v664 = vld [vmem:[#allocation9 + $0x158] sm:$0xff]
    %v665 = vld [vmem:[#allocation9 + $0x160] sm:$0xff]
    %v666 = vld [vmem:[#allocation9 + $0x168] sm:$0xff]
    %v667 = vld [vmem:[#allocation9 + $0x170] sm:$0xff]
    %v668 = vld [vmem:[#allocation9 + $0x178] sm:$0xff]
    %v669 = vld [vmem:[#allocation9 + $0x180] sm:$0xff]
    %v670 = vld [vmem:[#allocation9 + $0x188] sm:$0xff]
    %v671 = vld [vmem:[#allocation9 + $0x190] sm:$0xff]
    %v672 = vld [vmem:[#allocation9 + $0x198] sm:$0xff]
    %v673 = vld [vmem:[#allocation9 + $0x1a0] sm:$0xff]
    %v674 = vld [vmem:[#allocation9 + $0x1a8] sm:$0xff]
    %v675 = vld [vmem:[#allocation9 + $0x1b0] sm:$0xff]
    %v676 = vld [vmem:[#allocation9 + $0x1b8] sm:$0xff]
    %v677 = vld [vmem:[#allocation9 + $0x1c0] sm:$0xff]
    %v678 = vld [vmem:[#allocation9 + $0x1c8] sm:$0xff]
    %v679 = vld [vmem:[#allocation9 + $0x1d0] sm:$0xff]
    %v680 = vld [vmem:[#allocation9 + $0x1d8] sm:$0xff]
    %v681 = vld [vmem:[#allocation9 + $0x1e0] sm:$0xff]
    %v682 = vld [vmem:[#allocation9 + $0x1e8] sm:$0xff]
    %v683 = vld [vmem:[#allocation9 + $0x1f0] sm:$0xff]
    %v684 = vld [vmem:[#allocation9 + $0x1f8] sm:$0xff]
    %v685 = vld [vmem:[%s4] sm:$0x3]
    %v687 = vperm.slane %v685, 0
    %v688 = vperm.slane %v685, 1
    %v755 = vunpack.c.l.b16 %v621
    %v756 = vunpack.c.h.b16 %v621
    %v757 = vunpack.c.l.b16 %v622
    %v758 = vunpack.c.h.b16 %v622
    %v759 = vunpack.c.l.b16 %v623
    %v760 = vunpack.c.h.b16 %v623
    %v761 = vunpack.c.l.b16 %v624
    %v762 = vunpack.c.h.b16 %v624
    %v763 = vunpack.c.l.b16 %v625
    %v764 = vunpack.c.h.b16 %v625
    %v765 = vunpack.c.l.b16 %v626
    %v766 = vunpack.c.h.b16 %v626
    %v767 = vunpack.c.l.b16 %v627
    %v768 = vunpack.c.h.b16 %v627
    %v769 = vunpack.c.l.b16 %v628
    %v770 = vunpack.c.h.b16 %v628
    %v771 = vunpack.c.l.b16 %v629
    %v772 = vunpack.c.h.b16 %v629
    %v773 = vunpack.c.l.b16 %v630
    %v774 = vunpack.c.h.b16 %v630
    %v775 = vunpack.c.l.b16 %v631
    %v776 = vunpack.c.h.b16 %v631
    %v777 = vunpack.c.l.b16 %v632
    %v778 = vunpack.c.h.b16 %v632
    %v779 = vunpack.c.l.b16 %v633
    %v780 = vunpack.c.h.b16 %v633
    %v781 = vunpack.c.l.b16 %v634
    %v782 = vunpack.c.h.b16 %v634
    %v783 = vunpack.c.l.b16 %v635
    %v784 = vunpack.c.h.b16 %v635
    %v785 = vunpack.c.l.b16 %v636
    %v786 = vunpack.c.h.b16 %v636
    %v787 = vunpack.c.l.b16 %v637
    %v788 = vunpack.c.h.b16 %v637
    %v789 = vunpack.c.l.b16 %v638
    %v790 = vunpack.c.h.b16 %v638
    %v791 = vunpack.c.l.b16 %v639
    %v792 = vunpack.c.h.b16 %v639
    %v793 = vunpack.c.l.b16 %v640
    %v794 = vunpack.c.h.b16 %v640
    %v795 = vunpack.c.l.b16 %v641
    %v796 = vunpack.c.h.b16 %v641
    %v797 = vunpack.c.l.b16 %v642
    %v798 = vunpack.c.h.b16 %v642
    %v799 = vunpack.c.l.b16 %v643
    %v800 = vunpack.c.h.b16 %v643
    %v801 = vunpack.c.l.b16 %v644
    %v802 = vunpack.c.h.b16 %v644
    %v803 = vunpack.c.l.b16 %v645
    %v804 = vunpack.c.h.b16 %v645
    %v805 = vunpack.c.l.b16 %v646
    %v806 = vunpack.c.h.b16 %v646
    %v807 = vunpack.c.l.b16 %v647
    %v808 = vunpack.c.h.b16 %v647
    %v809 = vunpack.c.l.b16 %v648
    %v810 = vunpack.c.h.b16 %v648
    %v811 = vunpack.c.l.b16 %v649
    %v812 = vunpack.c.h.b16 %v649
    %v813 = vunpack.c.l.b16 %v650
    %v814 = vunpack.c.h.b16 %v650
    %v815 = vunpack.c.l.b16 %v651
    %v816 = vunpack.c.h.b16 %v651
    %v817 = vunpack.c.l.b16 %v652
    %v818 = vunpack.c.h.b16 %v652
    %v819 = vunpack.c.l.b16 %v653
    %v820 = vunpack.c.h.b16 %v653
    %v821 = vunpack.c.l.b16 %v654
    %v822 = vunpack.c.h.b16 %v654
    %v823 = vunpack.c.l.b16 %v655
    %v824 = vunpack.c.h.b16 %v655
    %v825 = vunpack.c.l.b16 %v656
    %v826 = vunpack.c.h.b16 %v656
    %v827 = vunpack.c.l.b16 %v657
    %v828 = vunpack.c.h.b16 %v657
    %v829 = vunpack.c.l.b16 %v658
    %v830 = vunpack.c.h.b16 %v658
    %v831 = vunpack.c.l.b16 %v659
    %v832 = vunpack.c.h.b16 %v659
    %v833 = vunpack.c.l.b16 %v660
    %v834 = vunpack.c.h.b16 %v660
    %v835 = vunpack.c.l.b16 %v661
    %v836 = vunpack.c.h.b16 %v661
    %v837 = vunpack.c.l.b16 %v662
    %v838 = vunpack.c.h.b16 %v662
    %v839 = vunpack.c.l.b16 %v663
    %v840 = vunpack.c.h.b16 %v663
    %v841 = vunpack.c.l.b16 %v664
    %v842 = vunpack.c.h.b16 %v664
    %v843 = vunpack.c.l.b16 %v665
    %v844 = vunpack.c.h.b16 %v665
    %v845 = vunpack.c.l.b16 %v666
    %v846 = vunpack.c.h.b16 %v666
    %v847 = vunpack.c.l.b16 %v667
    %v848 = vunpack.c.h.b16 %v667
    %v849 = vunpack.c.l.b16 %v668
    %v850 = vunpack.c.h.b16 %v668
    %v851 = vunpack.c.l.b16 %v669
    %v852 = vunpack.c.h.b16 %v669
    %v853 = vunpack.c.l.b16 %v670
    %v854 = vunpack.c.h.b16 %v670
    %v855 = vunpack.c.l.b16 %v671
    %v856 = vunpack.c.h.b16 %v671
    %v857 = vunpack.c.l.b16 %v672
    %v858 = vunpack.c.h.b16 %v672
    %v859 = vunpack.c.l.b16 %v673
    %v860 = vunpack.c.h.b16 %v673
    %v861 = vunpack.c.l.b16 %v674
    %v862 = vunpack.c.h.b16 %v674
    %v863 = vunpack.c.l.b16 %v675
    %v864 = vunpack.c.h.b16 %v675
    %v865 = vunpack.c.l.b16 %v676
    %v866 = vunpack.c.h.b16 %v676
    %v867 = vunpack.c.l.b16 %v677
    %v868 = vunpack.c.h.b16 %v677
    %v869 = vunpack.c.l.b16 %v678
    %v870 = vunpack.c.h.b16 %v678
    %v871 = vunpack.c.l.b16 %v679
    %v872 = vunpack.c.h.b16 %v679
    %v873 = vunpack.c.l.b16 %v680
    %v874 = vunpack.c.h.b16 %v680
    %v875 = vunpack.c.l.b16 %v681
    %v876 = vunpack.c.h.b16 %v681
    %v877 = vunpack.c.l.b16 %v682
    %v878 = vunpack.c.h.b16 %v682
    %v879 = vunpack.c.l.b16 %v683
    %v880 = vunpack.c.h.b16 %v683
    %v881 = vunpack.c.l.b16 %v684
    %v882 = vunpack.c.h.b16 %v684
    %v883 = vpack.c.b16 %v757, %v755
    %v884 = vpack.c.b16 %v758, %v756
    %v885 = vpack.c.b16 %v761, %v759
    %v886 = vpack.c.b16 %v762, %v760
    %v887 = vpack.c.b16 %v765, %v763
    %v888 = vpack.c.b16 %v766, %v764
    %v889 = vpack.c.b16 %v769, %v767
    %v890 = vpack.c.b16 %v770, %v768
    %v891 = vpack.c.b16 %v773, %v771
    %v892 = vpack.c.b16 %v774, %v772
    %v893 = vpack.c.b16 %v777, %v775
    %v894 = vpack.c.b16 %v778, %v776
    %v895 = vpack.c.b16 %v781, %v779
    %v896 = vpack.c.b16 %v782, %v780
    %v897 = vpack.c.b16 %v785, %v783
    %v898 = vpack.c.b16 %v786, %v784
    %v899 = vpack.c.b16 %v789, %v787
    %v900 = vpack.c.b16 %v790, %v788
    %v901 = vpack.c.b16 %v793, %v791
    %v902 = vpack.c.b16 %v794, %v792
    %v903 = vpack.c.b16 %v797, %v795
    %v904 = vpack.c.b16 %v798, %v796
    %v905 = vpack.c.b16 %v801, %v799
    %v906 = vpack.c.b16 %v802, %v800
    %v907 = vpack.c.b16 %v805, %v803
    %v908 = vpack.c.b16 %v806, %v804
    %v909 = vpack.c.b16 %v809, %v807
    %v910 = vpack.c.b16 %v810, %v808
    %v911 = vpack.c.b16 %v813, %v811
    %v912 = vpack.c.b16 %v814, %v812
    %v913 = vpack.c.b16 %v817, %v815
    %v914 = vpack.c.b16 %v818, %v816
    %v915 = vpack.c.b16 %v821, %v819
    %v916 = vpack.c.b16 %v822, %v820
    %v917 = vpack.c.b16 %v825, %v823
    %v918 = vpack.c.b16 %v826, %v824
    %v919 = vpack.c.b16 %v829, %v827
    %v920 = vpack.c.b16 %v830, %v828
    %v921 = vpack.c.b16 %v833, %v831
    %v922 = vpack.c.b16 %v834, %v832
    %v923 = vpack.c.b16 %v837, %v835
    %v924 = vpack.c.b16 %v838, %v836
    %v925 = vpack.c.b16 %v841, %v839
    %v926 = vpack.c.b16 %v842, %v840
    %v927 = vpack.c.b16 %v845, %v843
    %v928 = vpack.c.b16 %v846, %v844
    %v929 = vpack.c.b16 %v849, %v847
    %v930 = vpack.c.b16 %v850, %v848
    %v931 = vpack.c.b16 %v853, %v851
    %v932 = vpack.c.b16 %v854, %v852
    %v933 = vpack.c.b16 %v857, %v855
    %v934 = vpack.c.b16 %v858, %v856
    %v935 = vpack.c.b16 %v861, %v859
    %v936 = vpack.c.b16 %v862, %v860
    %v937 = vpack.c.b16 %v865, %v863
    %v938 = vpack.c.b16 %v866, %v864
    %v939 = vpack.c.b16 %v869, %v867
    %v940 = vpack.c.b16 %v870, %v868
    %v941 = vpack.c.b16 %v873, %v871
    %v942 = vpack.c.b16 %v874, %v872
    %v943 = vpack.c.b16 %v877, %v875
    %v944 = vpack.c.b16 %v878, %v876
    %v945 = vpack.c.b16 %v881, %v879
    %v946 = vpack.c.b16 %v882, %v880
    %1011 = vmatpush.bf16.msra.mxu0 %v897
    %1012 = vmatpush.bf16.msra.mxu0 %v895
    %1013 = vmatpush.bf16.msra.mxu0 %v893
    %1014 = vmatpush.bf16.msra.mxu0 %v891
    %1015 = vmatpush.bf16.msra.mxu0 %v889
    %1016 = vmatpush.bf16.msra.mxu0 %v887
    %1017 = vmatpush.bf16.msra.mxu0 %v885
    %1018 = vmatpush.bf16.msra.mxu0 %v883
    %1019 = vmatmul.bf16.gmra.mxu0 %v617
    %v1020 = vpop.f32.mrf.mxu0
    %v1021 = vadd.f32 %v687, %v1020
    %v1022 = vpop.f32.mrf.mxu0
    %v1023 = vadd.f32 %v687, %v1022
    %1024 = vdwg.mxu0
    %1025 = vmatpush.bf16.msra.mxu0 %v913
    %1026 = vmatpush.bf16.msra.mxu0 %v911
    %1027 = vmatpush.bf16.msra.mxu0 %v909
    %1028 = vmatpush.bf16.msra.mxu0 %v907
    %1029 = vmatpush.bf16.msra.mxu0 %v905
    %1030 = vmatpush.bf16.msra.mxu0 %v903
    %1031 = vmatpush.bf16.msra.mxu0 %v901
    %1032 = vmatpush.bf16.msra.mxu0 %v899
    %1033 = vmatmul.bf16.gmra.mxu0 %v618
    %v1034 = vpop.f32.mrf.mxu0
    %v1035 = vadd.f32 %v1021, %v1034
    %v1036 = vpop.f32.mrf.mxu0
    %v1037 = vadd.f32 %v1023, %v1036
    %1038 = vdwg.mxu0
    %1039 = vmatpush.bf16.msra.mxu0 %v929
    %1040 = vmatpush.bf16.msra.mxu0 %v927
    %1041 = vmatpush.bf16.msra.mxu0 %v925
    %1042 = vmatpush.bf16.msra.mxu0 %v923
    %1043 = vmatpush.bf16.msra.mxu0 %v921
    %1044 = vmatpush.bf16.msra.mxu0 %v919
    %1045 = vmatpush.bf16.msra.mxu0 %v917
    %1046 = vmatpush.bf16.msra.mxu0 %v915
    %1047 = vmatmul.bf16.gmra.mxu0 %v619
    %v1048 = vpop.f32.mrf.mxu0
    %v1049 = vadd.f32 %v1035, %v1048
    %v1050 = vpop.f32.mrf.mxu0
    %v1051 = vadd.f32 %v1037, %v1050
    %1052 = vdwg.mxu0
    %1053 = vmatpush.bf16.msra.mxu0 %v945
    %1054 = vmatpush.bf16.msra.mxu0 %v943
    %1055 = vmatpush.bf16.msra.mxu0 %v941
    %1056 = vmatpush.bf16.msra.mxu0 %v939
    %1057 = vmatpush.bf16.msra.mxu0 %v937
    %1058 = vmatpush.bf16.msra.mxu0 %v935
    %1059 = vmatpush.bf16.msra.mxu0 %v933
    %1060 = vmatpush.bf16.msra.mxu0 %v931
    %1061 = vmatmul.bf16.gmra.mxu0 %v620
    %v1062 = vpop.f32.mrf.mxu0
    %v1063 = vadd.f32 %v1049, %v1062
    %v1064 = vpop.f32.mrf.mxu0
    %v1065 = vadd.f32 %v1051, %v1064
    %1066 = vdwg.mxu0
    %1067 = vmatpush.bf16.msra.mxu0 %v898
    %1068 = vmatpush.bf16.msra.mxu0 %v896
    %1069 = vmatpush.bf16.msra.mxu0 %v894
    %1070 = vmatpush.bf16.msra.mxu0 %v892
    %1071 = vmatpush.bf16.msra.mxu0 %v890
    %1072 = vmatpush.bf16.msra.mxu0 %v888
    %1073 = vmatpush.bf16.msra.mxu0 %v886
    %1074 = vmatpush.bf16.msra.mxu0 %v884
    %1075 = vmatmul.bf16.gmra.mxu0 %v617
    %v1076 = vpop.f32.mrf.mxu0
    %v1077 = vadd.f32 %v688, %v1076
    %v1078 = vpop.f32.mrf.mxu0
    %v1079 = vadd.f32 %v688, %v1078
    %1080 = vdwg.mxu0
    %1081 = vmatpush.bf16.msra.mxu0 %v914
    %1082 = vmatpush.bf16.msra.mxu0 %v912
    %1083 = vmatpush.bf16.msra.mxu0 %v910
    %1084 = vmatpush.bf16.msra.mxu0 %v908
    %1085 = vmatpush.bf16.msra.mxu0 %v906
    %1086 = vmatpush.bf16.msra.mxu0 %v904
    %1087 = vmatpush.bf16.msra.mxu0 %v902
    %1088 = vmatpush.bf16.msra.mxu0 %v900
    %1089 = vmatmul.bf16.gmra.mxu0 %v618
    %v1090 = vpop.f32.mrf.mxu0
    %v1091 = vadd.f32 %v1077, %v1090
    %v1092 = vpop.f32.mrf.mxu0
    %v1093 = vadd.f32 %v1079, %v1092
    %1094 = vdwg.mxu0
    %1095 = vmatpush.bf16.msra.mxu0 %v930
    %1096 = vmatpush.bf16.msra.mxu0 %v928
    %1097 = vmatpush.bf16.msra.mxu0 %v926
    %1098 = vmatpush.bf16.msra.mxu0 %v924
    %1099 = vmatpush.bf16.msra.mxu0 %v922
    %1100 = vmatpush.bf16.msra.mxu0 %v920
    %1101 = vmatpush.bf16.msra.mxu0 %v918
    %1102 = vmatpush.bf16.msra.mxu0 %v916
    %1103 = vmatmul.bf16.gmra.mxu0 %v619
    %v1104 = vpop.f32.mrf.mxu0
    %v1105 = vadd.f32 %v1091, %v1104
    %v1106 = vpop.f32.mrf.mxu0
    %v1107 = vadd.f32 %v1093, %v1106
    %1108 = vdwg.mxu0
    %1109 = vmatpush.bf16.msra.mxu0 %v946
    %1110 = vmatpush.bf16.msra.mxu0 %v944
    %1111 = vmatpush.bf16.msra.mxu0 %v942
    %1112 = vmatpush.bf16.msra.mxu0 %v940
    %1113 = vmatpush.bf16.msra.mxu0 %v938
    %1114 = vmatpush.bf16.msra.mxu0 %v936
    %1115 = vmatpush.bf16.msra.mxu0 %v934
    %1116 = vmatpush.bf16.msra.mxu0 %v932
    %1117 = vmatmul.bf16.gmra.mxu0 %v620
    %v1118 = vpop.f32.mrf.mxu0
    %v1119 = vadd.f32 %v1105, %v1118
    %v1120 = vpop.f32.mrf.mxu0
    %v1121 = vadd.f32 %v1107, %v1120
    %1122 = vdwg.mxu0
    %v1123 = vmul.f32 %v1063, 0.2
    %v1124 = vmul.f32 %v1119, 0.2
    %v1125 = vmul.f32 %v1065, 0.2
    %v1126 = vmul.f32 %v1121, 0.2
    %v1127 = vmax.f32 %v1063, %v1123
    %v1128 = vmax.f32 %v1119, %v1124
    %v1129 = vmax.f32 %v1065, %v1125
    %v1130 = vmax.f32 %v1121, %v1126
    %v1131 = vld [vmem:[%s5] sm:$0x3]
    %v1133 = vperm.slane %v1131, 0
    %v1134 = vperm.slane %v1131, 1
    %v1137 = vmul.f32 %v1127, %v1133
    %v1138 = vmul.f32 %v1128, %v1134
    %v1139 = vmul.f32 %v1129, %v1133
    %v1140 = vmul.f32 %v1130, %v1134
    %v1141 = vadd.f32 %v1137, %v1138
    %1142 = vadd.xlane.f32.xlu0 %v1141
    %v1143 = vpop.xlane.xlu0 %1142
    %v1144 = vadd.f32 %v1139, %v1140
    %1145 = vadd.xlane.f32.xlu0 %v1144
    %v1146 = vpop.xlane.xlu0 %1145
    %s1147 = sld [smem:[#allocation2]]
    %v1148 = vstv %s1147
    %v1149 = vadd.f32 %v1143, %v1148
    %v1150 = vadd.f32 %v1146, %v1148
    %1151 = vst [vmem:[#allocation11] sm:$0xff] %v1149
    %1152 = vst [vmem:[#allocation11 + $0x8] sm:$0xff] %v1150
    // Predicated region
    $region46: #{tpu_custom_call.1} parent=1 // pred_check
      _
    $region47: #{tpu_custom_call.1} parent=1 // pred_check_branch
      %1154 = sbr.rel (0) target = $region49
    $region48: #{tpu_custom_call.1} parent=1 // pred_region
      %1156 = vsyncadd [#allocation5], 0
      %s1157 = sshll.u32 [#allocation11], 4
      %s1158 = int_to_ptr.vmem [resolvable:$true] %s1157
      %s1159 = sshll.u32 %s7, 4
      %s1160 = int_to_ptr.hbm [resolvable:$true] %s1159
      %1165 = dma.vmem_to_hbm [thread:$0]  %s1158, 256, %s1160, [#allocation5], 128, 128, 8
    $region49: #{tpu_custom_call.1} parent=1 // pred_fallthru
      _
    // Predicated region
    $region50: #{tpu_custom_call.1} parent=1 // pred_check
      _
    $region51: #{tpu_custom_call.1} parent=1 // pred_check_branch
      %1167 = sbr.rel (0) target = $region53
    $region52: #{tpu_custom_call.1} parent=1 // pred_region
      %1169 = dma.done [#allocation5], 256
    $region53: #{tpu_custom_call.1} parent=1 // pred_fallthru
      _
    %1170 = vsyncpa [#allocation4], 1
    %1171 = vsyncpa [#allocation7], 1
    %1172 = vsyncpa [#allocation10], 1
    %1173 = vsyncpa [#allocation5], 1

</llo_original>
